<compile_context>
chip_gen: v6e
topology: v6e:2x2x1
jax: 0.10.0
libtpu: 0.0.40
codegen_flags: <defaults>
</compile_context>

<pallas_src>
import math

import jax
import jax.numpy as jnp
from jax.experimental import pallas as pl
from jax.experimental.pallas import tpu as pltpu

OUT_FEATURES = 2
OUT_PAD = 128  # lane-dense padded output width (unmasked full-lane vst)


# ----------------------------- Pallas kernel ---------------------------------
def mlp3_kernel(x_ref, w1_ref, b1_ref, w2_ref, b2_ref, w3_ref, b3_ref, o_ref):
    # Layer 1: (TB,4) @ (4,W) + (1,W) -> tanh   (bias sublane-broadcast in-kernel)
    h1 = jnp.tanh(
        jnp.dot(x_ref[...], w1_ref[...], preferred_element_type=jnp.float32)
        + b1_ref[...]
    )
    # Layer 2: (TB,W) @ (W,W) + (1,W) -> tanh
    h2 = jnp.tanh(
        jnp.dot(h1, w2_ref[...], preferred_element_type=jnp.float32) + b2_ref[...]
    )
    # Output layer: (TB,W) @ (W,128) + (1,128) -- lane-dense unmasked store.
    out = jnp.dot(h2, w3_ref[...], preferred_element_type=jnp.float32) + b3_ref[...]
    o_ref[...] = out.astype(o_ref.dtype)


# ------------------------- tile selection heuristic ---------------------------
def _pick_batch_tile(b, max_tb=1024):
    """Largest f32-sublane-aligned batch tile; prefer >= 2 grid steps (v7x 2 TCs)."""
    if b <= 16:
        return 8
    half = max(8, ((b // 2) // 8) * 8)
    return min(max_tb, half)


# -------------------------- one-time parameter prep ---------------------------
def prepare_params(params):
    """Hoisted out of the forward path: lane-pad w3/b3 (2->128), shape biases (1, .)."""
    width = params["w1"].shape[1]
    w3p = (
        jnp.zeros((width, OUT_PAD), jnp.float32)
        .at[:, :OUT_FEATURES]
        .set(params["w3"].astype(jnp.float32))
    )
    b3p = (
        jnp.zeros((1, OUT_PAD), jnp.float32)
        .at[:, :OUT_FEATURES]
        .set(params["b3"].reshape(1, OUT_FEATURES).astype(jnp.float32))
    )
    return {
        "w1": params["w1"].astype(jnp.float32),
        "b1": params["b1"].reshape(1, width).astype(jnp.float32),
        "w2": params["w2"].astype(jnp.float32),
        "b2": params["b2"].reshape(1, width).astype(jnp.float32),
        "w3p": w3p,
        "b3p": b3p,
    }


# ------------------------------- forward pass ---------------------------------
def neural_net_forward(x, prepared, *, tb=None):
    """Forward pass of NeuralNet(layers=3, width=W, activation=Tanh).

    x: any shape (B, ...) -- flattened to (B, 4) like nn.Flatten().
    prepared: output of prepare_params() (lane-padded w3/b3, (1, .) biases).
    tb: batch tile (multiple of 8 for f32 sublanes); None -> auto.
    """
    b = x.shape[0]
    x2d = x.reshape(b, -1).astype(jnp.float32)  # nn.Flatten()
    assert x2d.shape[1] == 4, "NeuralNet expects 4 input features after flatten"

    w1, b1 = prepared["w1"], prepared["b1"]
    w2, b2 = prepared["w2"], prepared["b2"]
    w3p, b3p = prepared["w3p"], prepared["b3p"]
    width = w1.shape[1]

    if tb is None:
        tb = _pick_batch_tile(b)
    assert tb % 8 == 0, "batch tile must be a multiple of 8 (f32 sublane)"

    # Pad batch to a multiple of the batch tile (no-op when tb divides b).
    num_tiles = pl.cdiv(b, tb)
    bp = num_tiles * tb
    if bp != b:
        x2d = jnp.pad(x2d, ((0, bp - b), (0, 0)))

    # Advisory cost estimate for the XLA scheduler (true output columns, not pad).
    flops = 2 * bp * (4 * width + width * width + width * OUT_FEATURES)
    bytes_accessed = 4 * (
        bp * 4                                          # x
        + 4 * width + width * width + width * OUT_PAD   # weights (resident)
        + 2 * width + OUT_PAD                           # biases (resident)
        + bp * OUT_PAD                                  # output
    )
    cost = pl.CostEstimate(
        flops=flops, transcendentals=2 * bp * width, bytes_accessed=bytes_accessed
    )

    out_padded = pl.pallas_call(
        mlp3_kernel,
        out_shape=jax.ShapeDtypeStruct((bp, OUT_PAD), jnp.float32),
        grid=(num_tiles,),
        in_specs=[
            pl.BlockSpec((tb, 4), lambda i: (i, 0)),           # x: tiled over batch
            pl.BlockSpec((4, width), lambda i: (0, 0)),        # w1: VMEM-resident
            pl.BlockSpec((1, width), lambda i: (0, 0)),        # b1 (row, bcast in-kernel)
            pl.BlockSpec((width, width), lambda i: (0, 0)),    # w2
            pl.BlockSpec((1, width), lambda i: (0, 0)),        # b2
            pl.BlockSpec((width, OUT_PAD), lambda i: (0, 0)),  # w3 (lane-padded)
            pl.BlockSpec((1, OUT_PAD), lambda i: (0, 0)),      # b3 (lane-padded)
        ],
        out_specs=pl.BlockSpec((tb, OUT_PAD), lambda i: (i, 0)),
        compiler_params=pltpu.CompilerParams(
            dimension_semantics=("parallel",)
        ),
        cost_estimate=cost,
    )(x2d, w1, b1, w2, b2, w3p, b3p)

    # TODO(synk): for very large batches the padded (bp, 128) output writeback is
    # ~64x the useful bytes -- switch to a transposed (OUT_FEATURES, bp) output with
    # batch on the lane axis (one XLU transpose per tile; XLU is idle here).
    # TODO(synk): if width is ever scaled >= 256, feed bf16 operands to the dots
    # (keep f32 accumulation + f32 tanh/bias math), set pipeline_mode=pl.Buffered(1)
    # on the resident weight specs, set vmem_limit_bytes explicitly, and K-tile w2
    # with an "arbitrary" reduction axis for v7x's 64 MiB VMEM.
    return out_padded[:b, :OUT_FEATURES]


# -------------------------- deterministic init --------------------------------
def kaiming_uniform(key, fan_in, fan_out):
    # Mimics torch.nn.init.kaiming_uniform_ defaults (a=0, fan_in, leaky_relu):
    # bound = sqrt(2) * sqrt(3 / fan_in); weight stored as (fan_in, fan_out).
    bound = math.sqrt(2.0) * math.sqrt(3.0 / fan_in)
    return jax.random.uniform(
        key, (fan_in, fan_out), dtype=jnp.float32, minval=-bound, maxval=bound
    )


def init_params(key, width):
    k1, k2, k3 = jax.random.split(key, 3)
    return {
        "w1": kaiming_uniform(k1, 4, width),
        "b1": jnp.full((1, width), 0.01, dtype=jnp.float32),
        "w2": kaiming_uniform(k2, width, width),
        "b2": jnp.full((1, width), 0.01, dtype=jnp.float32),
        "w3": kaiming_uniform(k3, width, OUT_FEATURES),
        "b3": jnp.full((1, OUT_FEATURES), 0.01, dtype=jnp.float32),
    }


# ------------------------------- main ------------------------------------------
if __name__ == "__main__":
    key = jax.random.PRNGKey(0)
    kx, kp = jax.random.split(key)

    width = 32
    batch = 32  # auto-picked tb=16 -> 2 grid steps (exercises pipelining / v7x 2 TCs)
    # Input shaped (batch, 2, 2) so nn.Flatten() -> (batch, 4) features.
    x = jax.random.normal(kx, (batch, 2, 2), dtype=jnp.float32)
    params = init_params(kp, width)
    prepared = prepare_params(params)  # one-time prep, hoisted out of forward

    fwd = jax.jit(neural_net_forward, static_argnames=("tb",))
    out = fwd(x, prepared)
    jax.block_until_ready(out)

    # Pure-JAX reference check of the fused kernel.
    x2d = x.reshape(batch, -1)
    h1 = jnp.tanh(x2d @ params["w1"] + params["b1"])
    h2 = jnp.tanh(h1 @ params["w2"] + params["b2"])
    ref = h2 @ params["w3"] + params["b3"]
    assert out.shape == (batch, OUT_FEATURES)
    assert jnp.allclose(out, ref, atol=1e-5, rtol=1e-5)

    print("KERNEL_OK")
</pallas_src>

<mosaic_0001>
module attributes {stable_mosaic.version = 11 : i64} {
  func.func @mlp3_kernel(%arg0: i32, %arg1: memref<16x4xf32, #tpu.memory_space<vmem>>, %arg2: memref<4x32xf32, #tpu.memory_space<vmem>>, %arg3: memref<1x32xf32, #tpu.memory_space<vmem>>, %arg4: memref<32x32xf32, #tpu.memory_space<vmem>>, %arg5: memref<1x32xf32, #tpu.memory_space<vmem>>, %arg6: memref<32x128xf32, #tpu.memory_space<vmem>>, %arg7: memref<1x128xf32, #tpu.memory_space<vmem>>, %arg8: memref<16x128xf32, #tpu.memory_space<vmem>>) attributes {dimension_semantics = [#tpu.dimension_semantics<parallel>], iteration_bounds = array<i64: 2>, scalar_prefetch = 0 : i64, scratch_operands = 0 : i64, tpu.core_type = #tpu.core_type<tc>, window_params = [{transform_indices = @transform_0, window_bounds = array<i64: 16, 4>}, {pipeline_mode = #tpu.pipeline_mode<synchronous>, transform_indices = @transform_1, window_bounds = array<i64: 4, 32>}, {pipeline_mode = #tpu.pipeline_mode<synchronous>, transform_indices = @transform_2, window_bounds = array<i64: 1, 32>}, {pipeline_mode = #tpu.pipeline_mode<synchronous>, transform_indices = @transform_3, window_bounds = array<i64: 32, 32>}, {pipeline_mode = #tpu.pipeline_mode<synchronous>, transform_indices = @transform_4, window_bounds = array<i64: 1, 32>}, {pipeline_mode = #tpu.pipeline_mode<synchronous>, transform_indices = @transform_5, window_bounds = array<i64: 32, 128>}, {pipeline_mode = #tpu.pipeline_mode<synchronous>, transform_indices = @transform_6, window_bounds = array<i64: 1, 128>}, {transform_indices = @transform_7, window_bounds = array<i64: 16, 128>}]} {
    %c0 = arith.constant 0 : index
    %c0_0 = arith.constant 0 : index
    %0 = vector.load %arg1[%c0, %c0_0] : memref<16x4xf32, #tpu.memory_space<vmem>>, vector<16x4xf32>
    %c0_1 = arith.constant 0 : index
    %c0_2 = arith.constant 0 : index
    %1 = vector.load %arg2[%c0_1, %c0_2] : memref<4x32xf32, #tpu.memory_space<vmem>>, vector<4x32xf32>
    %cst = arith.constant dense<0.000000e+00> : vector<16x32xf32>
    %2 = tpu.matmul %0, %1, %cst {dimension_numbers = #tpu.dot_dimension_numbers<[1], [0], [0], [1], [0, 0, 1, 1], [], []>} : vector<16x4xf32>, vector<4x32xf32>, vector<16x32xf32> -> vector<16x32xf32>
    %c0_3 = arith.constant 0 : index
    %c0_4 = arith.constant 0 : index
    %3 = vector.load %arg3[%c0_3, %c0_4] : memref<1x32xf32, #tpu.memory_space<vmem>>, vector<1x32xf32>
    %4 = vector.broadcast %3 : vector<1x32xf32> to vector<16x32xf32>
    %5 = arith.addf %2, %4 : vector<16x32xf32>
    %6 = math.tanh %5 : vector<16x32xf32>
    %c0_5 = arith.constant 0 : index
    %c0_6 = arith.constant 0 : index
    %7 = vector.load %arg4[%c0_5, %c0_6] : memref<32x32xf32, #tpu.memory_space<vmem>>, vector<32x32xf32>
    %cst_7 = arith.constant dense<0.000000e+00> : vector<16x32xf32>
    %8 = tpu.matmul %6, %7, %cst_7 {dimension_numbers = #tpu.dot_dimension_numbers<[1], [0], [0], [1], [0, 0, 1, 1], [], []>} : vector<16x32xf32>, vector<32x32xf32>, vector<16x32xf32> -> vector<16x32xf32>
    %c0_8 = arith.constant 0 : index
    %c0_9 = arith.constant 0 : index
    %9 = vector.load %arg5[%c0_8, %c0_9] : memref<1x32xf32, #tpu.memory_space<vmem>>, vector<1x32xf32>
    %10 = vector.broadcast %9 : vector<1x32xf32> to vector<16x32xf32>
    %11 = arith.addf %8, %10 : vector<16x32xf32>
    %12 = math.tanh %11 : vector<16x32xf32>
    %c0_10 = arith.constant 0 : index
    %c0_11 = arith.constant 0 : index
    %13 = vector.load %arg6[%c0_10, %c0_11] : memref<32x128xf32, #tpu.memory_space<vmem>>, vector<32x128xf32>
    %cst_12 = arith.constant dense<0.000000e+00> : vector<16x128xf32>
    %14 = tpu.matmul %12, %13, %cst_12 {dimension_numbers = #tpu.dot_dimension_numbers<[1], [0], [0], [1], [0, 0, 1, 1], [], []>} : vector<16x32xf32>, vector<32x128xf32>, vector<16x128xf32> -> vector<16x128xf32>
    %c0_13 = arith.constant 0 : index
    %c0_14 = arith.constant 0 : index
    %15 = vector.load %arg7[%c0_13, %c0_14] : memref<1x128xf32, #tpu.memory_space<vmem>>, vector<1x128xf32>
    %16 = vector.broadcast %15 : vector<1x128xf32> to vector<16x128xf32>
    %17 = arith.addf %14, %16 : vector<16x128xf32>
    %c0_15 = arith.constant 0 : index
    %c0_16 = arith.constant 0 : index
    %18 = vector.load %arg8[%c0_15, %c0_16] : memref<16x128xf32, #tpu.memory_space<vmem>>, vector<16x128xf32>
    tpu.vector_store %arg8[%c0_15, %c0_16], %17 {strides = array<i32>} : memref<16x128xf32, #tpu.memory_space<vmem>>, vector<16x128xf32>,
    return
  }
  func.func @transform_0(%arg0: i32) -> (i32, i32) {
    %c0_i32 = arith.constant 0 : i32
    %c0_i32_0 = arith.constant 0 : i32
    return %arg0, %c0_i32 : i32, i32
  }
  func.func @transform_1(%arg0: i32) -> (i32, i32) {
    %c0_i32 = arith.constant 0 : i32
    %c0_i32_0 = arith.constant 0 : i32
    %c0_i32_1 = arith.constant 0 : i32
    return %c0_i32, %c0_i32_0 : i32, i32
  }
  func.func @transform_2(%arg0: i32) -> (i32, i32) {
    %c0_i32 = arith.constant 0 : i32
    %c0_i32_0 = arith.constant 0 : i32
    %c0_i32_1 = arith.constant 0 : i32
    return %c0_i32, %c0_i32_0 : i32, i32
  }
  func.func @transform_3(%arg0: i32) -> (i32, i32) {
    %c0_i32 = arith.constant 0 : i32
    %c0_i32_0 = arith.constant 0 : i32
    %c0_i32_1 = arith.constant 0 : i32
    return %c0_i32, %c0_i32_0 : i32, i32
  }
  func.func @transform_4(%arg0: i32) -> (i32, i32) {
    %c0_i32 = arith.constant 0 : i32
    %c0_i32_0 = arith.constant 0 : i32
    %c0_i32_1 = arith.constant 0 : i32
    return %c0_i32, %c0_i32_0 : i32, i32
  }
  func.func @transform_5(%arg0: i32) -> (i32, i32) {
    %c0_i32 = arith.constant 0 : i32
    %c0_i32_0 = arith.constant 0 : i32
    %c0_i32_1 = arith.constant 0 : i32
    return %c0_i32, %c0_i32_0 : i32, i32
  }
  func.func @transform_6(%arg0: i32) -> (i32, i32) {
    %c0_i32 = arith.constant 0 : i32
    %c0_i32_0 = arith.constant 0 : i32
    %c0_i32_1 = arith.constant 0 : i32
    return %c0_i32, %c0_i32_0 : i32, i32
  }
  func.func @transform_7(%arg0: i32) -> (i32, i32) {
    %c0_i32 = arith.constant 0 : i32
    %c0_i32_0 = arith.constant 0 : i32
    return %arg0, %c0_i32 : i32, i32
  }
}

</mosaic_0001>

<llo_original>
// kernel: neural_net_forward.1
$region0: #{neural_net_forward.1}
  #allocation0 [shape = 'u32[]', space=smem, size = 0x4, offset = 0x4, fixed_abs, tag = 'smem constant byte address 0x4 - core index']
  #allocation1 [shape = 'u32[144,128]{1,0:T(1,128)}', space=vmem, size = 0x12000, scoped, tag = 'internal scratch']
  %s0 = inlined_call_operand.vmem [shape: f32[32,4], index: 0, kind: input, shape index: {}]
  %s1 = inlined_call_operand.vmem [shape: f32[4,32], index: 1, kind: input, shape index: {}]
  %s2 = inlined_call_operand.vmem [shape: f32[1,32], index: 2, kind: input, shape index: {}]
  %s3 = inlined_call_operand.vmem [shape: f32[32,32], index: 3, kind: input, shape index: {}]
  %s4 = inlined_call_operand.vmem [shape: f32[1,32], index: 4, kind: input, shape index: {}]
  %s5 = inlined_call_operand.hbm [shape: f32[32,128], index: 5, kind: input, shape index: {}]
  %s6 = inlined_call_operand.vmem [shape: f32[1,128], index: 6, kind: input, shape index: {}]
  %s7 = inlined_call_operand.vmem [shape: f32[32,128], index: 7, kind: output, shape index: {}]
  %s8 = sld [smem:[#allocation0]]
  $region65: #{neural_net_forward.1} parent=0
    _
  %s10 = ssub.s32 1, %s8
  %s11 = scalar_select 0, %s10, %s8
  $region1: #{neural_net_forward.1} parent=0
    #allocation2 [shape = 'u8[16384]{0}', space=vmem, size = 0x4000, scoped, tag = 'input window, operand 5, single buffered']
    #allocation3 [shape = 's32[2]{0}', space=sflag, size = 0x8, scoped, tag = 'scoped memory for neural_net_forward.1']
    %12 = vsyncpa [#allocation3], 0
    loop: start=0, step=1, limit=4
    $region2: #{neural_net_forward.1} parent=1 // loop_pre_header
      _
    $region3: #{neural_net_forward.1} parent=1 // loop_header
      %s14 = sphi 0, %s18
      %p15 = scmp.ge.s32.totalorder %s14, 4
      %s24 = sphi 0, %s26
      %s27 = sphi 0, %s24
      %s28 = sphi 0, %s27
      %s44 = sphi 0, %s28
      %s48 = sphi 0, %s48
      %s50 = sphi 0, %s48
      %s51 = sphi 0, %s50
      %s65 = sphi 0, %s51
      %s69 = sphi 0, %s69
      %s71 = sphi 0, %s69
      %s72 = sphi 0, %s71
      %s86 = sphi 0, %s72
      %s90 = sphi 0, %s90
      %s92 = sphi 0, %s90
      %s93 = sphi 0, %s92
      %s107 = sphi 0, %s93
      %s111 = sphi 0, %s111
      %s113 = sphi 0, %s111
      %s114 = sphi 0, %s113
      %s128 = sphi 0, %s114
      %s132 = sphi 0, %s132
      %s134 = sphi 0, %s132
      %s135 = sphi 0, %s134
      %s149 = sphi 0, %s135
      %s153 = sphi 0, %s153
      %s155 = sphi 0, %s153
      %s156 = sphi 0, %s155
      %s170 = sphi 0, %s156
      %s176 = sphi 0, %s178
      %s179 = sphi 0, %s176
      %s180 = sphi 0, %s179
      %s196 = sphi 0, %s180
    $region4: #{neural_net_forward.1} parent=1 // loop_header_branch
      %17 = sbr.rel (%p15) target = $region8
    $region5: #{neural_net_forward.1} parent=1 // loop_body
      %s19 = ssub.s32 %s14, 1
      %s20 = ssub.s32 %s14, 2
      %s21 = sadd.s32 %s14, 1
      %s22 = ssub.s32 %s14, %s21
      %p23 = scmp.eq.s32.totalorder %s22, 0
      %s25 = sadd.s32 %s24, 1
      %s26 = scalar_select %p23, %s24, %s25
      %p29 = pneg %p23
      %p30 = scmp.eq.s32.totalorder %s14, 1
      %p31 = por %p29, %p30
      %p32 = scmp.ne.s32.totalorder %s24, %s27
      %p33 = scmp.eq.s32.totalorder %s14, 0
      %p34 = por %p32, %p33
      %p35 = scmp.ne.s32.totalorder %s24, %s27
      %p36 = scmp.eq.s32.totalorder %s19, 1
      %p37 = por %p35, %p36
      %p38 = scmp.ne.s32.totalorder %s27, %s28
      %p39 = scmp.eq.s32.totalorder %s19, 0
      %p40 = por %p38, %p39
      %p41 = scmp.ne.s32.totalorder %s27, %s28
      %p42 = scmp.eq.s32.totalorder %s20, 1
      %p43 = por %p41, %p42
      %p45 = scmp.ne.s32.totalorder %s28, %s44
      %p46 = scmp.eq.s32.totalorder %s20, 0
      %p47 = por %p45, %p46
      %s49 = sadd.s32 %s48, 1
      %p52 = scmp.eq.s32.totalorder %s14, 1
      %p53 = scmp.ne.s32.totalorder %s48, %s50
      %p54 = scmp.eq.s32.totalorder %s14, 0
      %p55 = por %p53, %p54
      %p56 = scmp.ne.s32.totalorder %s48, %s50
      %p57 = scmp.eq.s32.totalorder %s19, 1
      %p58 = por %p56, %p57
      %p59 = scmp.ne.s32.totalorder %s50, %s51
      %p60 = scmp.eq.s32.totalorder %s19, 0
      %p61 = por %p59, %p60
      %p62 = scmp.ne.s32.totalorder %s50, %s51
      %p63 = scmp.eq.s32.totalorder %s20, 1
      %p64 = por %p62, %p63
      %p66 = scmp.ne.s32.totalorder %s51, %s65
      %p67 = scmp.eq.s32.totalorder %s20, 0
      %p68 = por %p66, %p67
      %s70 = sadd.s32 %s69, 1
      %p73 = scmp.eq.s32.totalorder %s14, 1
      %p74 = scmp.ne.s32.totalorder %s69, %s71
      %p75 = scmp.eq.s32.totalorder %s14, 0
      %p76 = por %p74, %p75
      %p77 = scmp.ne.s32.totalorder %s69, %s71
      %p78 = scmp.eq.s32.totalorder %s19, 1
      %p79 = por %p77, %p78
      %p80 = scmp.ne.s32.totalorder %s71, %s72
      %p81 = scmp.eq.s32.totalorder %s19, 0
      %p82 = por %p80, %p81
      %p83 = scmp.ne.s32.totalorder %s71, %s72
      %p84 = scmp.eq.s32.totalorder %s20, 1
      %p85 = por %p83, %p84
      %p87 = scmp.ne.s32.totalorder %s72, %s86
      %p88 = scmp.eq.s32.totalorder %s20, 0
      %p89 = por %p87, %p88
      %s91 = sadd.s32 %s90, 1
      %p94 = scmp.eq.s32.totalorder %s14, 1
      %p95 = scmp.ne.s32.totalorder %s90, %s92
      %p96 = scmp.eq.s32.totalorder %s14, 0
      %p97 = por %p95, %p96
      %p98 = scmp.ne.s32.totalorder %s90, %s92
      %p99 = scmp.eq.s32.totalorder %s19, 1
      %p100 = por %p98, %p99
      %p101 = scmp.ne.s32.totalorder %s92, %s93
      %p102 = scmp.eq.s32.totalorder %s19, 0
      %p103 = por %p101, %p102
      %p104 = scmp.ne.s32.totalorder %s92, %s93
      %p105 = scmp.eq.s32.totalorder %s20, 1
      %p106 = por %p104, %p105
      %p108 = scmp.ne.s32.totalorder %s93, %s107
      %p109 = scmp.eq.s32.totalorder %s20, 0
      %p110 = por %p108, %p109
      %s112 = sadd.s32 %s111, 1
      %p115 = scmp.eq.s32.totalorder %s14, 1
      %p116 = scmp.ne.s32.totalorder %s111, %s113
      %p117 = scmp.eq.s32.totalorder %s14, 0
      %p118 = por %p116, %p117
      %p119 = scmp.ne.s32.totalorder %s111, %s113
      %p120 = scmp.eq.s32.totalorder %s19, 1
      %p121 = por %p119, %p120
      %p122 = scmp.ne.s32.totalorder %s113, %s114
      %p123 = scmp.eq.s32.totalorder %s19, 0
      %p124 = por %p122, %p123
      %p125 = scmp.ne.s32.totalorder %s113, %s114
      %p126 = scmp.eq.s32.totalorder %s20, 1
      %p127 = por %p125, %p126
      %p129 = scmp.ne.s32.totalorder %s114, %s128
      %p130 = scmp.eq.s32.totalorder %s20, 0
      %p131 = por %p129, %p130
      %s133 = sadd.s32 %s132, 1
      %p136 = scmp.eq.s32.totalorder %s14, 1
      %p137 = scmp.ne.s32.totalorder %s132, %s134
      %p138 = scmp.eq.s32.totalorder %s14, 0
      %p139 = por %p137, %p138
      %p140 = scmp.ne.s32.totalorder %s132, %s134
      %p141 = scmp.eq.s32.totalorder %s19, 1
      %p142 = por %p140, %p141
      %p143 = scmp.ne.s32.totalorder %s134, %s135
      %p144 = scmp.eq.s32.totalorder %s19, 0
      %p145 = por %p143, %p144
      %p146 = scmp.ne.s32.totalorder %s134, %s135
      %p147 = scmp.eq.s32.totalorder %s20, 1
      %p148 = por %p146, %p147
      %p150 = scmp.ne.s32.totalorder %s135, %s149
      %p151 = scmp.eq.s32.totalorder %s20, 0
      %p152 = por %p150, %p151
      %s154 = sadd.s32 %s153, 1
      %p157 = scmp.eq.s32.totalorder %s14, 1
      %p158 = scmp.ne.s32.totalorder %s153, %s155
      %p159 = scmp.eq.s32.totalorder %s14, 0
      %p160 = por %p158, %p159
      %p161 = scmp.ne.s32.totalorder %s153, %s155
      %p162 = scmp.eq.s32.totalorder %s19, 1
      %p163 = por %p161, %p162
      %p164 = scmp.ne.s32.totalorder %s155, %s156
      %p165 = scmp.eq.s32.totalorder %s19, 0
      %p166 = por %p164, %p165
      %p167 = scmp.ne.s32.totalorder %s155, %s156
      %p168 = scmp.eq.s32.totalorder %s20, 1
      %p169 = por %p167, %p168
      %p171 = scmp.ne.s32.totalorder %s156, %s170
      %p172 = scmp.eq.s32.totalorder %s20, 0
      %p173 = por %p171, %p172
      %s174 = ssub.s32 %s14, %s21
      %p175 = scmp.eq.s32.totalorder %s174, 0
      %s177 = sadd.s32 %s176, 1
      %s178 = scalar_select %p175, %s176, %s177
      %p181 = pneg %p175
      %p182 = scmp.eq.s32.totalorder %s14, 1
      %p183 = por %p181, %p182
      %p184 = scmp.ne.s32.totalorder %s176, %s179
      %p185 = scmp.eq.s32.totalorder %s14, 0
      %p186 = por %p184, %p185
      %p187 = scmp.ne.s32.totalorder %s176, %s179
      %p188 = scmp.eq.s32.totalorder %s19, 1
      %p189 = por %p187, %p188
      %p190 = scmp.ne.s32.totalorder %s179, %s180
      %p191 = scmp.eq.s32.totalorder %s19, 0
      %p192 = por %p190, %p191
      %p193 = scmp.ne.s32.totalorder %s179, %s180
      %p194 = scmp.eq.s32.totalorder %s20, 1
      %p195 = por %p193, %p194
      %p197 = scmp.ne.s32.totalorder %s180, %s196
      %p198 = scmp.eq.s32.totalorder %s20, 0
      %p199 = por %p197, %p198
      %p200 = scmp.le.s32.totalorder 1, %s14
      %p201 = scmp.lt.s32.totalorder %s14, 3
      %p202 = pnand %p200, %p201
      %p203 = pneg %p202
      // Predicated region
      $region9: #{neural_net_forward.1} parent=5 // pred_check
        _
      $region10: #{neural_net_forward.1} parent=5 // pred_check_branch
        %205 = sbr.rel (%p202) target = $region12
      $region11: #{neural_net_forward.1} parent=5 // pred_region
        %s206 = ssub.s32 %s14, 1
        // Predicated region
        $region13: #{neural_net_forward.1} parent=11 // pred_check
          %p207 = pneg %p61
        $region14: #{neural_net_forward.1} parent=11 // pred_check_branch
          %209 = sbr.rel (%p207) target = $region16
        $region15: #{neural_net_forward.1} parent=11 // pred_region
          _
        $region16: #{neural_net_forward.1} parent=11 // pred_fallthru
          _
        // Predicated region
        $region17: #{neural_net_forward.1} parent=11 // pred_check
          %p210 = pneg %p82
        $region18: #{neural_net_forward.1} parent=11 // pred_check_branch
          %212 = sbr.rel (%p210) target = $region20
        $region19: #{neural_net_forward.1} parent=11 // pred_region
          _
        $region20: #{neural_net_forward.1} parent=11 // pred_fallthru
          _
        // Predicated region
        $region21: #{neural_net_forward.1} parent=11 // pred_check
          %p213 = pneg %p103
        $region22: #{neural_net_forward.1} parent=11 // pred_check_branch
          %215 = sbr.rel (%p213) target = $region24
        $region23: #{neural_net_forward.1} parent=11 // pred_region
          _
        $region24: #{neural_net_forward.1} parent=11 // pred_fallthru
          _
        // Predicated region
        $region25: #{neural_net_forward.1} parent=11 // pred_check
          %p216 = pneg %p124
        $region26: #{neural_net_forward.1} parent=11 // pred_check_branch
          %218 = sbr.rel (%p216) target = $region28
        $region27: #{neural_net_forward.1} parent=11 // pred_region
          _
        $region28: #{neural_net_forward.1} parent=11 // pred_fallthru
          _
        // Predicated region
        $region29: #{neural_net_forward.1} parent=11 // pred_check
          %p219 = pneg %p145
        $region30: #{neural_net_forward.1} parent=11 // pred_check_branch
          %221 = sbr.rel (%p219) target = $region32
        $region31: #{neural_net_forward.1} parent=11 // pred_region
          %s223 = ssub.s32 512, 512
          %224 = vsyncadd [#allocation3], %s223
          %s225 = sshll.u32 [#allocation2], 4
          %s226 = int_to_ptr.vmem [resolvable:$true] %s225
          %231 = dma.hbm_to_vmem [thread:$0]  %s5, 512, %s226, [#allocation3], 128, 128, 8
        $region32: #{neural_net_forward.1} parent=11 // pred_fallthru
          _
        // Predicated region
        $region33: #{neural_net_forward.1} parent=11 // pred_check
          %p232 = pneg %p166
        $region34: #{neural_net_forward.1} parent=11 // pred_check_branch
          %234 = sbr.rel (%p232) target = $region36
        $region35: #{neural_net_forward.1} parent=11 // pred_region
          _
        $region36: #{neural_net_forward.1} parent=11 // pred_fallthru
          _
      $region12: #{neural_net_forward.1} parent=5 // pred_fallthru
        _
      %p235 = scmp.lt.s32.totalorder %s14, 2
      // Predicated region
      $region37: #{neural_net_forward.1} parent=5 // pred_check
        %p236 = pneg %p235
      $region38: #{neural_net_forward.1} parent=5 // pred_check_branch
        %238 = sbr.rel (%p236) target = $region40
      $region39: #{neural_net_forward.1} parent=5 // pred_region
        // Predicated region
        $region41: #{neural_net_forward.1} parent=39 // pred_check
          %p239 = pneg %p34
        $region42: #{neural_net_forward.1} parent=39 // pred_check_branch
          %241 = sbr.rel (%p239) target = $region44
        $region43: #{neural_net_forward.1} parent=39 // pred_region
          %s242 = smul.u32 2, %s14
          %p243 = scmp.lt.s32.totalorder %s242, 3
          %s244 = scalar_select %p243, %s242, 3
          %s245 = smul.addr %s244, 8
          %s246 = scalar_lea.vmem %s0, %s245
          %s247 = smul.u32 2, %s14
        $region44: #{neural_net_forward.1} parent=39 // pred_fallthru
          _
      $region40: #{neural_net_forward.1} parent=5 // pred_fallthru
        _
      %p248 = scmp.le.s32.totalorder 1, %s14
      %p249 = scmp.lt.s32.totalorder %s14, 3
      %p250 = pnand %p248, %p249
      %p251 = pneg %p250
      // Predicated region
      $region45: #{neural_net_forward.1} parent=5 // pred_check
        _
      $region46: #{neural_net_forward.1} parent=5 // pred_check_branch
        %253 = sbr.rel (%p250) target = $region48
      $region47: #{neural_net_forward.1} parent=5 // pred_region
        %s254 = ssub.s32 %s14, 1
        // Predicated region
        $region49: #{neural_net_forward.1} parent=47 // pred_check
          %p255 = pneg %p145
        $region50: #{neural_net_forward.1} parent=47 // pred_check_branch
          %257 = sbr.rel (%p255) target = $region52
        $region51: #{neural_net_forward.1} parent=47 // pred_region
          %258 = dma.done [#allocation3], 512
        $region52: #{neural_net_forward.1} parent=47 // pred_fallthru
          _
        %s259 = smul.u32 2, %s19
        %p260 = scmp.lt.s32.totalorder %s259, 3
        %s261 = scalar_select %p260, %s259, 3
        %s262 = smul.addr %s261, 8
        %s263 = scalar_lea.vmem %s0, %s262
        %p264 = pneg %p40
        %p265 = pneg %p37
        %p266 = pneg %p61
        %p267 = pneg %p58
        %p268 = pneg %p82
        %p269 = pneg %p79
        %p270 = pneg %p103
        %p271 = pneg %p100
        %p272 = pneg %p124
        %p273 = pneg %p121
        %p274 = pneg %p145
        %p275 = pneg %p142
        %p276 = pneg %p166
        %p277 = pneg %p163
        %p278 = pneg %p192
        %p279 = pneg %p189
        %s280 = smul.u32 2, %s19
        %p281 = scmp.lt.s32.totalorder %s280, 3
        %s282 = scalar_select %p281, %s280, 3
        %s283 = smul.addr %s282, 8
        %s284 = scalar_lea.vmem %s7, %s283
        %s285 = smul.u32 2, %s19
        %p286 = scmp.lt.s32.totalorder %s285, 3
        %s287 = scalar_select %p286, %s285, 3
        %s288 = smul.addr %s287, 8
        %s289 = scalar_lea.vmem %s0, %s288
        %s290 = smul.u32 2, %s19
        %s291 = smul.u32 2, %s19
        %p292 = scmp.lt.s32.totalorder %s291, 3
        %s293 = scalar_select %p292, %s291, 3
        %s294 = smul.addr %s293, 8
        %s295 = scalar_lea.vmem %s7, %s294
        %s296 = smul.u32 2, %s19
        %v297 = vld [vmem:[%s289] sm:$0xff]
        %v298 = vld [vmem:[%s289 + $0x8] sm:$0xff]
        %v299 = vld [vmem:[%s1] sm:$0xf]
        %v300 = vld [vmem:[%s2] sm:$0x1]
        %v302 = vlaneseq
        %v303 = vshrl.u32 %v302, 7
        %v304 = vsub.s32 0, %v303
        %v305 = vrot.slane %v300, %v304
        %vm307 = vcmask 31744
        %v309 = vsel %vm307, %v297, 0
        %v312 = vsel %vm307, %v298, 0
        %vm314 = vcmask 1043456
        %v316 = vsel %vm314, %v299, 0
        %318 = vmatprep.subr.mxu0 0.0
        %319 = vmatpush1.msra.mxu0 0.0
        %320 = vmatprep.subr.mxu0 0.0
        %321 = vmatpush1.msra.mxu0 0.0
        %322 = vmatprep.subr.mxu0 0.0
        %323 = vmatpush1.msra.mxu0 0.0
        %324 = vmatprep.subr.mxu0 0.0
        %325 = vmatpush1.msra.mxu0 0.0
        %326 = vmatprep.subr.mxu0 0.0
        %327 = vmatpush1.msra.mxu0 0.0
        %328 = vmatprep.subr.mxu0 0.0
        %329 = vmatpush1.msra.mxu0 0.0
        %330 = vmatprep.subr.mxu0 0.0
        %331 = vmatpush1.msra.mxu0 0.0
        %332 = vmatprep.subr.mxu0 0.0
        %333 = vmatpush1.msra.mxu0 0.0
        %334 = vmatprep.subr.mxu0 0.0
        %335 = vmatpush1.msra.mxu0 0.0
        %336 = vmatprep.subr.mxu0 0.0
        %337 = vmatpush1.msra.mxu0 0.0
        %338 = vmatprep.subr.mxu0 0.0
        %339 = vmatpush1.msra.mxu0 0.0
        %340 = vmatprep.subr.mxu0 0.0
        %341 = vmatpush1.msra.mxu0 0.0
        %342 = vmatprep.subr.mxu0 0.0
        %343 = vmatpush1.msra.mxu0 0.0
        %344 = vmatprep.subr.mxu0 0.0
        %345 = vmatpush1.msra.mxu0 0.0
        %346 = vmatprep.subr.mxu0 0.0
        %347 = vmatpush1.msra.mxu0 0.0
        %348 = vmatprep.subr.mxu0 0.0
        %349 = vmatpush1.msra.mxu0 %v316
        %350 = vmatprep.subr.mxu0 0.0
        %351 = vmatpush2.msra.mxu0 0.0
        %352 = vmatprep.subr.mxu0 0.0
        %353 = vmatpush2.msra.mxu0 0.0
        %354 = vmatprep.subr.mxu0 0.0
        %355 = vmatpush2.msra.mxu0 0.0
        %356 = vmatprep.subr.mxu0 0.0
        %357 = vmatpush2.msra.mxu0 0.0
        %358 = vmatprep.subr.mxu0 0.0
        %359 = vmatpush2.msra.mxu0 0.0
        %360 = vmatprep.subr.mxu0 0.0
        %361 = vmatpush2.msra.mxu0 0.0
        %362 = vmatprep.subr.mxu0 0.0
        %363 = vmatpush2.msra.mxu0 0.0
        %364 = vmatprep.subr.mxu0 0.0
        %365 = vmatpush2.msra.mxu0 0.0
        %366 = vmatprep.subr.mxu0 0.0
        %367 = vmatpush2.msra.mxu0 0.0
        %368 = vmatprep.subr.mxu0 0.0
        %369 = vmatpush2.msra.mxu0 0.0
        %370 = vmatprep.subr.mxu0 0.0
        %371 = vmatpush2.msra.mxu0 0.0
        %372 = vmatprep.subr.mxu0 0.0
        %373 = vmatpush2.msra.mxu0 0.0
        %374 = vmatprep.subr.mxu0 0.0
        %375 = vmatpush2.msra.mxu0 0.0
        %376 = vmatprep.subr.mxu0 0.0
        %377 = vmatpush2.msra.mxu0 0.0
        %378 = vmatprep.subr.mxu0 0.0
        %379 = vmatpush2.msra.mxu0 0.0
        %380 = vmatprep.subr.mxu0 0.0
        %381 = vmatpush2.msra.mxu0 0.0
        %382 = vmatprep.mubr.f32.mxu0 0.0
        %383 = vmatmul.mubr.f32.gmra.mxu0 %v309
        %v384 = vpop.f32.mrf.mxu0
        %v385 = vadd.f32 %v305, %v384
        %v386 = vpop.f32.mrf.mxu0
        %387 = vmatprep.mubr.f32.mxu0 0.0
        %388 = vmatmul.mubr.f32.gmra.mxu0 %v312
        %v389 = vpop.f32.mrf.mxu0
        %v390 = vadd.f32 %v305, %v389
        %v391 = vpop.f32.mrf.mxu0
        %392 = vdwg.mxu0
        %v393 = vtanh.pop %v385
        %v394 = vtanh.pop %v390
        %v395 = vld [vmem:[%s3] sm:$0xff]
        %v396 = vld [vmem:[%s3 + $0x8] sm:$0xff]
        %v397 = vld [vmem:[%s3 + $0x10] sm:$0xff]
        %v398 = vld [vmem:[%s3 + $0x18] sm:$0xff]
        %v399 = vld [vmem:[%s4] sm:$0x1]
        %v401 = vlaneseq
        %v402 = vshrl.u32 %v401, 7
        %v403 = vsub.s32 0, %v402
        %v404 = vrot.slane %v399, %v403
        %vm406 = vcmask 261120
        %v408 = vsel %vm406, %v393, 0
        %v411 = vsel %vm406, %v394, 0
        %413 = vmatprep.subr.mxu0 0.0
        %414 = vmatpush1.msra.mxu0 0.0
        %415 = vmatprep.subr.mxu0 0.0
        %416 = vmatpush1.msra.mxu0 0.0
        %417 = vmatprep.subr.mxu0 0.0
        %418 = vmatpush1.msra.mxu0 0.0
        %419 = vmatprep.subr.mxu0 0.0
        %420 = vmatpush1.msra.mxu0 0.0
        %421 = vmatprep.subr.mxu0 0.0
        %422 = vmatpush1.msra.mxu0 0.0
        %423 = vmatprep.subr.mxu0 0.0
        %424 = vmatpush1.msra.mxu0 0.0
        %425 = vmatprep.subr.mxu0 0.0
        %426 = vmatpush1.msra.mxu0 0.0
        %427 = vmatprep.subr.mxu0 0.0
        %428 = vmatpush1.msra.mxu0 0.0
        %429 = vmatprep.subr.mxu0 0.0
        %430 = vmatpush1.msra.mxu0 0.0
        %431 = vmatprep.subr.mxu0 0.0
        %432 = vmatpush1.msra.mxu0 0.0
        %433 = vmatprep.subr.mxu0 0.0
        %434 = vmatpush1.msra.mxu0 0.0
        %435 = vmatprep.subr.mxu0 0.0
        %436 = vmatpush1.msra.mxu0 0.0
        %437 = vmatprep.subr.mxu0 0.0
        %438 = vmatpush1.msra.mxu0 %v398
        %439 = vmatprep.subr.mxu0 0.0
        %440 = vmatpush1.msra.mxu0 %v397
        %441 = vmatprep.subr.mxu0 0.0
        %442 = vmatpush1.msra.mxu0 %v396
        %443 = vmatprep.subr.mxu0 0.0
        %444 = vmatpush1.msra.mxu0 %v395
        %445 = vmatprep.subr.mxu0 0.0
        %446 = vmatpush2.msra.mxu0 0.0
        %447 = vmatprep.subr.mxu0 0.0
        %448 = vmatpush2.msra.mxu0 0.0
        %449 = vmatprep.subr.mxu0 0.0
        %450 = vmatpush2.msra.mxu0 0.0
        %451 = vmatprep.subr.mxu0 0.0
        %452 = vmatpush2.msra.mxu0 0.0
        %453 = vmatprep.subr.mxu0 0.0
        %454 = vmatpush2.msra.mxu0 0.0
        %455 = vmatprep.subr.mxu0 0.0
        %456 = vmatpush2.msra.mxu0 0.0
        %457 = vmatprep.subr.mxu0 0.0
        %458 = vmatpush2.msra.mxu0 0.0
        %459 = vmatprep.subr.mxu0 0.0
        %460 = vmatpush2.msra.mxu0 0.0
        %461 = vmatprep.subr.mxu0 0.0
        %462 = vmatpush2.msra.mxu0 0.0
        %463 = vmatprep.subr.mxu0 0.0
        %464 = vmatpush2.msra.mxu0 0.0
        %465 = vmatprep.subr.mxu0 0.0
        %466 = vmatpush2.msra.mxu0 0.0
        %467 = vmatprep.subr.mxu0 0.0
        %468 = vmatpush2.msra.mxu0 0.0
        %469 = vmatprep.subr.mxu0 0.0
        %470 = vmatpush2.msra.mxu0 0.0
        %471 = vmatprep.subr.mxu0 0.0
        %472 = vmatpush2.msra.mxu0 0.0
        %473 = vmatprep.subr.mxu0 0.0
        %474 = vmatpush2.msra.mxu0 0.0
        %475 = vmatprep.subr.mxu0 0.0
        %476 = vmatpush2.msra.mxu0 0.0
        %477 = vmatprep.mubr.f32.mxu0 0.0
        %478 = vmatmul.mubr.f32.gmra.mxu0 %v408
        %v479 = vpop.f32.mrf.mxu0
        %v480 = vadd.f32 %v404, %v479
        %v481 = vpop.f32.mrf.mxu0
        %482 = vmatprep.mubr.f32.mxu0 0.0
        %483 = vmatmul.mubr.f32.gmra.mxu0 %v411
        %v484 = vpop.f32.mrf.mxu0
        %v485 = vadd.f32 %v404, %v484
        %v486 = vpop.f32.mrf.mxu0
        %487 = vdwg.mxu0
        %v488 = vtanh.pop %v480
        %v489 = vtanh.pop %v485
        %v490 = vld [vmem:[#allocation2] sm:$0xff]
        %v491 = vld [vmem:[#allocation2 + $0x8] sm:$0xff]
        %v492 = vld [vmem:[#allocation2 + $0x10] sm:$0xff]
        %v493 = vld [vmem:[#allocation2 + $0x18] sm:$0xff]
        %v494 = vld [vmem:[%s6] sm:$0x1]
        %v496 = vlaneseq
        %v497 = vshrl.u32 %v496, 7
        %v498 = vsub.s32 0, %v497
        %v499 = vrot.slane %v494, %v498
        %v502 = vsel %vm406, %v488, 0
        %v505 = vsel %vm406, %v489, 0
        %507 = vmatprep.subr.mxu0 0.0
        %508 = vmatpush1.msra.mxu0 0.0
        %509 = vmatprep.subr.mxu0 0.0
        %510 = vmatpush1.msra.mxu0 0.0
        %511 = vmatprep.subr.mxu0 0.0
        %512 = vmatpush1.msra.mxu0 0.0
        %513 = vmatprep.subr.mxu0 0.0
        %514 = vmatpush1.msra.mxu0 0.0
        %515 = vmatprep.subr.mxu0 0.0
        %516 = vmatpush1.msra.mxu0 0.0
        %517 = vmatprep.subr.mxu0 0.0
        %518 = vmatpush1.msra.mxu0 0.0
        %519 = vmatprep.subr.mxu0 0.0
        %520 = vmatpush1.msra.mxu0 0.0
        %521 = vmatprep.subr.mxu0 0.0
        %522 = vmatpush1.msra.mxu0 0.0
        %523 = vmatprep.subr.mxu0 0.0
        %524 = vmatpush1.msra.mxu0 0.0
        %525 = vmatprep.subr.mxu0 0.0
        %526 = vmatpush1.msra.mxu0 0.0
        %527 = vmatprep.subr.mxu0 0.0
        %528 = vmatpush1.msra.mxu0 0.0
        %529 = vmatprep.subr.mxu0 0.0
        %530 = vmatpush1.msra.mxu0 0.0
        %531 = vmatprep.subr.mxu0 0.0
        %532 = vmatpush1.msra.mxu0 %v493
        %533 = vmatprep.subr.mxu0 0.0
        %534 = vmatpush1.msra.mxu0 %v492
        %535 = vmatprep.subr.mxu0 0.0
        %536 = vmatpush1.msra.mxu0 %v491
        %537 = vmatprep.subr.mxu0 0.0
        %538 = vmatpush1.msra.mxu0 %v490
        %539 = vmatprep.subr.mxu0 0.0
        %540 = vmatpush2.msra.mxu0 0.0
        %541 = vmatprep.subr.mxu0 0.0
        %542 = vmatpush2.msra.mxu0 0.0
        %543 = vmatprep.subr.mxu0 0.0
        %544 = vmatpush2.msra.mxu0 0.0
        %545 = vmatprep.subr.mxu0 0.0
        %546 = vmatpush2.msra.mxu0 0.0
        %547 = vmatprep.subr.mxu0 0.0
        %548 = vmatpush2.msra.mxu0 0.0
        %549 = vmatprep.subr.mxu0 0.0
        %550 = vmatpush2.msra.mxu0 0.0
        %551 = vmatprep.subr.mxu0 0.0
        %552 = vmatpush2.msra.mxu0 0.0
        %553 = vmatprep.subr.mxu0 0.0
        %554 = vmatpush2.msra.mxu0 0.0
        %555 = vmatprep.subr.mxu0 0.0
        %556 = vmatpush2.msra.mxu0 0.0
        %557 = vmatprep.subr.mxu0 0.0
        %558 = vmatpush2.msra.mxu0 0.0
        %559 = vmatprep.subr.mxu0 0.0
        %560 = vmatpush2.msra.mxu0 0.0
        %561 = vmatprep.subr.mxu0 0.0
        %562 = vmatpush2.msra.mxu0 0.0
        %563 = vmatprep.subr.mxu0 0.0
        %564 = vmatpush2.msra.mxu0 0.0
        %565 = vmatprep.subr.mxu0 0.0
        %566 = vmatpush2.msra.mxu0 0.0
        %567 = vmatprep.subr.mxu0 0.0
        %568 = vmatpush2.msra.mxu0 0.0
        %569 = vmatprep.subr.mxu0 0.0
        %570 = vmatpush2.msra.mxu0 0.0
        %571 = vmatprep.mubr.f32.mxu0 0.0
        %572 = vmatmul.mubr.f32.gmra.mxu0 %v502
        %v573 = vpop.f32.mrf.mxu0
        %v574 = vadd.f32 %v499, %v573
        %v575 = vpop.f32.mrf.mxu0
        %576 = vmatprep.mubr.f32.mxu0 0.0
        %577 = vmatmul.mubr.f32.gmra.mxu0 %v505
        %v578 = vpop.f32.mrf.mxu0
        %v579 = vadd.f32 %v499, %v578
        %v580 = vpop.f32.mrf.mxu0
        %581 = vdwg.mxu0
        %582 = vst [vmem:[%s295] sm:$0xff] %v574
        %583 = vst [vmem:[%s295 + $0x8] sm:$0xff] %v579
        %s584 = smul.u32 2, %s19
        %p585 = scmp.lt.s32.totalorder %s584, 3
        %s586 = scalar_select %p585, %s584, 3
        %s587 = smul.addr %s586, 8
        %s588 = scalar_lea.vmem %s7, %s587
        // Predicated region
        $region53: #{neural_net_forward.1} parent=47 // pred_check
          %p589 = pneg %p189
        $region54: #{neural_net_forward.1} parent=47 // pred_check_branch
          %591 = sbr.rel (%p589) target = $region56
        $region55: #{neural_net_forward.1} parent=47 // pred_region
          %s592 = smul.u32 2, %s19
        $region56: #{neural_net_forward.1} parent=47 // pred_fallthru
          _
      $region48: #{neural_net_forward.1} parent=5 // pred_fallthru
        _
      %p593 = scmp.le.s32.totalorder 2, %s14
      // Predicated region
      $region57: #{neural_net_forward.1} parent=5 // pred_check
        %p594 = pneg %p593
      $region58: #{neural_net_forward.1} parent=5 // pred_check_branch
        %596 = sbr.rel (%p594) target = $region60
      $region59: #{neural_net_forward.1} parent=5 // pred_region
        %s597 = ssub.s32 %s14, 2
        // Predicated region
        $region61: #{neural_net_forward.1} parent=59 // pred_check
          %p598 = pneg %p195
        $region62: #{neural_net_forward.1} parent=59 // pred_check_branch
          %600 = sbr.rel (%p598) target = $region64
        $region63: #{neural_net_forward.1} parent=59 // pred_region
          %s601 = smul.u32 2, %s20
          %p602 = scmp.lt.s32.totalorder %s601, 3
          %s603 = scalar_select %p602, %s601, 3
          %s604 = smul.addr %s603, 8
          %s605 = scalar_lea.vmem %s7, %s604
        $region64: #{neural_net_forward.1} parent=59 // pred_fallthru
          _
      $region60: #{neural_net_forward.1} parent=5 // pred_fallthru
        _
    $region6: #{neural_net_forward.1} parent=1 // loop_footer
      %s18 = sadd.s32 1, %s14
    $region7: #{neural_net_forward.1} parent=1 // loop_footer_branch
      %13 = sbr.rel target = $region3
    $region8: #{neural_net_forward.1} parent=1 // loop_exit
      _
    %606 = vsyncpa [#allocation3], 1
    %s607 = scalar_lea.sflag [#allocation3], 1
    %608 = vsyncpa %s607, 1

</llo_original>
